<compile_context>
chip_gen: v7x
topology: tpu7x:2x2x1
jax: 0.10.0
libtpu: 0.0.40
codegen_flags: <defaults>
</compile_context>

<pallas_src>
import functools

import jax
import jax.numpy as jnp
from jax.experimental import pallas as pl
from jax.experimental.pallas import tpu as pltpu

BN_EPS = 1e-5


def _lclayer_kernel(gsrc_ref, gtile_ref, idx_ref, shift1_ref, w2_ref, b2_ref,
                    wout_ref, bout_ref, out_ref, *, k, nt, chunk, n_chunks):
    d = gsrc_ref.shape[0]
    kn = k * nt

    col_idx = idx_ref[...]                                         # (1, K*nt) int32
    # Chunk-local row iota, built once; the chunk base is subtracted from the
    # tiny id row instead of offsetting the big iota.
    row_iota = jax.lax.broadcasted_iota(jnp.int32, (chunk, kn), 0)

    if n_chunks == 1:
        onehot = (col_idx == row_iota).astype(jnp.bfloat16)        # exact 0/1
        gathered = jnp.dot(gsrc_ref[...], onehot,
                           preferred_element_type=jnp.float32)     # (D, K*nt)
    else:
        def gather_chunk(c, acc):
            base = pl.multiple_of(c * chunk, chunk)
            g_chunk = gsrc_ref[:, pl.ds(base, chunk)]              # (D, chunk) bf16
            onehot = ((col_idx - base) == row_iota).astype(jnp.bfloat16)
            return acc + jnp.dot(g_chunk, onehot,
                                 preferred_element_type=jnp.float32)
        gathered = jax.lax.fori_loop(0, n_chunks, gather_chunk,
                                     jnp.zeros((d, kn), jnp.float32))
    # NOTE: an out-of-range neighbor id yields an all-zero one-hot column
    # (neighbor treated as the zero vector); PyTorch indexing would raise.

    # Center term (+ folded BN shift and MLP-1 bias), f32.
    center = gtile_ref[...] + shift1_ref[...]                      # (D, nt)

    # ReLU(center - neighbor) -> MLP-2 -> running max over K, as K static
    # lane-aligned nt-slices (no tiled-center / (D, K*nt) temporaries).
    w2 = w2_ref[...]
    maxed = None
    for j in range(k):
        hj = jnp.maximum(center - gathered[:, j * nt:(j + 1) * nt], 0.0)
        h2j = jnp.dot(w2, hj, preferred_element_type=jnp.float32)
        maxed = h2j if maxed is None else jnp.maximum(maxed, h2j)
    maxed = maxed + b2_ref[...]                                    # b2 commutes with max

    # conv_out; lane-dense store (last dim = nt).
    out = jnp.dot(wout_ref[...], maxed,
                  preferred_element_type=jnp.float32) + bout_ref[...]
    out_ref[...] = out.astype(out_ref.dtype)


def _vmem_capacity_bytes():
    try:
        return int(pltpu.get_tpu_info().vmem_capacity_bytes)
    except Exception:
        return None


def _pick_div(n, pref):
    """Largest multiple of 128 <= pref that divides n (or n itself if n <= pref)."""
    if n <= pref:
        return n
    t = (pref // 128) * 128
    while t >= 128:
        if n % t == 0:
            return t
        t -= 128
    return n


def lclayer_forward(feats_nchw, idxs, params, *, downsample,
                    n_tile=None, n_chunk=None, vmem_limit_bytes=None):
    """feats_nchw: (B, C_in, N, 1) f32 ; idxs: (B, N, K) int -> (B, C_in, N, 1)."""
    b, c_in, n, _ = feats_nchw.shape
    k = idxs.shape[2]
    d = params["w1"].shape[0]                                      # knn_dim

    # Per-generation sizing (v7x: 64 MiB VMEM per TC; v5e/v6e: 128 MiB).
    cap = _vmem_capacity_bytes()
    small_vmem = (cap is None) or cap <= 64 * 1024 * 1024
    if vmem_limit_bytes is None:
        vmem_limit_bytes = (48 if small_vmem else 100) * 1024 * 1024

    nt = _pick_div(n, 256 if small_vmem else 512) if n_tile is None else int(n_tile)
    assert n % nt == 0 and (nt == n or nt % 128 == 0), \
        "n_tile must divide N and be a multiple of 128 (or equal N)"
    n_tiles = n // nt

    chunk = (_pick_div(n, 512 if small_vmem else 1024)
             if n_chunk is None else int(n_chunk))
    assert n % chunk == 0 and (chunk == n or chunk % 128 == 0), \
        "n_chunk must divide N and be a multiple of 128 (or equal N)"
    n_chunks = n // chunk

    # NCHW is already channel-major; drop the trailing W=1 axis (free).
    x = feats_nchw[..., 0]                                         # (B, C_in, N)

    # Fold eval-mode BatchNorm into MLP-1, and (when downsampling) fold the
    # downsample conv into MLP-1 as well; the downsample bias cancels exactly
    # in (center - neighbor) and is dropped.
    scale = params["gamma"] * jax.lax.rsqrt(params["rv"] + BN_EPS)     # (D, 1)
    w1s = params["w1"] * scale                                         # (D, Dm)
    shift1 = scale * (params["b1"] - params["rm"]) + params["beta"]    # (D, 1)
    w_eff = jnp.dot(w1s, params["wds"]) if downsample else w1s         # (D, C_in)

    # Hoisted projection: ONE batched 1x1-conv matmul per call (plain XLA),
    # instead of once per N-tile inside the kernel.  Gather source cast once.
    g = jnp.einsum("oc,bcn->bon", w_eff, x)                            # (B, D, N) f32
    g_bf16 = g.astype(jnp.bfloat16)

    # Neighbor ids laid out per tile: column j*nt + i of tile t is the j-th
    # neighbor of query point t*nt + i.  Tiny int tensor, reshaped in XLA.
    idx_flat = (jnp.transpose(idxs.astype(jnp.int32), (0, 2, 1))       # (B, K, N)
                .reshape(b, k, n_tiles, nt)
                .transpose(0, 2, 1, 3)
                .reshape(b, n_tiles, 1, k * nt))                       # (B, NT, 1, K*nt)

    weights = [shift1, params["w2"], params["b2"], params["wout"], params["bout"]]

    kernel = functools.partial(_lclayer_kernel, k=k, nt=nt, chunk=chunk,
                               n_chunks=n_chunks)

    def _call(single_buffer_gather_src):
        gsrc_idx_map = lambda bi, ti: (bi, 0, 0)
        if single_buffer_gather_src and hasattr(pl, "Buffered"):
            # Gather source never changes across the N-tile axis: single-buffer
            # it so we don't pay 2x VMEM for a block that is never re-fetched.
            gsrc_spec = pl.BlockSpec((None, d, n), gsrc_idx_map,
                                     pipeline_mode=pl.Buffered(1))
        else:
            gsrc_spec = pl.BlockSpec((None, d, n), gsrc_idx_map)

        in_specs = [
            gsrc_spec,                                                  # g bf16, full N
            pl.BlockSpec((None, d, nt), lambda bi, ti: (bi, 0, ti)),    # g f32 center tile
            pl.BlockSpec((None, None, 1, k * nt),
                         lambda bi, ti: (bi, ti, 0, 0)),                # tile neighbor ids
        ] + [pl.BlockSpec(w.shape, lambda bi, ti: (0, 0)) for w in weights]

        out_specs = pl.BlockSpec((None, c_in, nt), lambda bi, ti: (bi, 0, ti))

        return pl.pallas_call(
            kernel,
            out_shape=jax.ShapeDtypeStruct((b, c_in, n), jnp.float32),
            grid_spec=pltpu.PrefetchScalarGridSpec(
                num_scalar_prefetch=0,
                grid=(b, n_tiles),
                in_specs=in_specs,
                out_specs=out_specs,
            ),
            compiler_params=pltpu.CompilerParams(
                dimension_semantics=("parallel", "parallel"),
                vmem_limit_bytes=vmem_limit_bytes),
        )(g_bf16, g, idx_flat, *weights)

    if n_tiles > 1:
        try:
            out_bcn = jax.block_until_ready(_call(True))
        except Exception:
            # Fallback if this JAX build rejects pipeline_mode / Buffered(1).
            out_bcn = _call(False)
    else:
        out_bcn = _call(False)

    return out_bcn[..., None]                                          # (B, C_in, N, 1)


def make_params(key, in_dim, knn_dim):
    """Deterministic synthetic parameters matching LCLayer(in_dim, knn_dim).

    Weights are channel-major (PyTorch Conv2d layout (out, in)); biases / BN
    parameters are stored as (out, 1).
    """
    downsample = in_dim > knn_dim
    mlp_in = knn_dim if downsample else in_dim
    ks = jax.random.split(key, 8)

    def w(k_, shape):
        return 0.1 * jax.random.normal(k_, shape, dtype=jnp.float32)

    params = {
        # KNNFeats.ds_net : Conv2d(in_dim, knn_dim, 1)
        "wds": w(ks[0], (knn_dim, in_dim)) if downsample else jnp.zeros((1, 1), jnp.float32),
        "bds": w(ks[1], (knn_dim, 1)) if downsample else jnp.zeros((1, 1), jnp.float32),
        # KNNFeats.mlp[0] : Conv2d(mlp_in, knn_dim, 1)
        "w1": w(ks[2], (knn_dim, mlp_in)),
        "b1": w(ks[3], (knn_dim, 1)),
        # KNNFeats.mlp[1] : BatchNorm2d(knn_dim), default init, eval mode
        "gamma": jnp.ones((knn_dim, 1), jnp.float32),
        "beta": jnp.zeros((knn_dim, 1), jnp.float32),
        "rm": jnp.zeros((knn_dim, 1), jnp.float32),
        "rv": jnp.ones((knn_dim, 1), jnp.float32),
        # KNNFeats.mlp[3] : Conv2d(knn_dim, knn_dim, 1)
        "w2": w(ks[4], (knn_dim, knn_dim)),
        "b2": w(ks[5], (knn_dim, 1)),
        # LCLayer.conv_out : Conv2d(knn_dim, in_dim, 1)
        "wout": w(ks[6], (in_dim, knn_dim)),
        "bout": w(ks[7], (in_dim, 1)),
    }
    return params, downsample


def reference_forward(feats_nchw, idxs, params, *, downsample):
    """Pure-JAX reference mirroring the PyTorch forward (eval-mode BN)."""
    x = feats_nchw[..., 0]                                            # (B, C, N)

    def conv(w_, b_, t):  # 1x1 conv, weights (out, in), bias (out, 1)
        y = jnp.einsum('oi,bi...->bo...', w_, t)
        return y + b_.reshape((1, -1) + (1,) * (t.ndim - 2))

    f = conv(params["wds"], params["bds"], x) if downsample else x     # (B, D, N)
    nn = jax.vmap(lambda fb, ib: fb[:, ib])(f, idxs)                   # (B, D, N, K)
    diff = f[..., None] - nn                                           # center - neighbor
    h = conv(params["w1"], params["b1"], diff)
    scale = params["gamma"] * jax.lax.rsqrt(params["rv"] + BN_EPS)
    shift = params["beta"] - params["rm"] * scale
    h = h * scale.reshape(1, -1, 1, 1) + shift.reshape(1, -1, 1, 1)
    h = jnp.maximum(h, 0.0)
    h = conv(params["w2"], params["b2"], h)
    maxed = jnp.max(h, axis=3)                                         # max over K
    out = conv(params["wout"], params["bout"], maxed)                  # (B, C, N)
    return out[..., None]


if __name__ == "__main__":
    def run_case(name, b, in_dim, knn_dim, n, k, n_tile=None, n_chunk=None):
        key = jax.random.PRNGKey(0)
        k_feat, k_idx, k_par = jax.random.split(key, 3)
        feats = jax.random.normal(k_feat, (b, in_dim, n, 1), dtype=jnp.float32)
        idxs = jax.random.randint(k_idx, (b, n, k), 0, n, dtype=jnp.int32)
        params, downsample = make_params(k_par, in_dim, knn_dim)

        out = lclayer_forward(feats, idxs, params, downsample=downsample,
                              n_tile=n_tile, n_chunk=n_chunk)
        out = jax.block_until_ready(out)

        ref = reference_forward(feats, idxs, params, downsample=downsample)
        assert out.shape == (b, in_dim, n, 1)
        # bf16 is only used for the exact 0/1 one-hot and the gathered operand;
        # the tolerance covers that single bf16 rounding step.
        err = float(jnp.max(jnp.abs(out - ref)))
        assert jnp.allclose(out, ref, atol=5e-3, rtol=5e-3), \
            f"{name}: mismatch vs reference (max abs err {err})"

    # Small case: downsample path, single tile / single chunk.
    run_case("small", b=2, in_dim=16, knn_dim=8, n=16, k=4)
    # Tiled case: no downsample, exercises the N-tile grid axis, the chunked
    # one-hot gather loop, and the single-buffered gather-source BlockSpec.
    run_case("tiled", b=2, in_dim=8, knn_dim=16, n=256, k=8,
             n_tile=128, n_chunk=128)

    print("KERNEL_OK")
</pallas_src>

<mosaic_0001>
module attributes {stable_mosaic.version = 11 : i64} {
  func.func @_lclayer_kernel(%arg0: i32, %arg1: i32, %arg2: memref<1x8x16xbf16, #tpu.memory_space<vmem>>, %arg3: memref<1x8x16xf32, #tpu.memory_space<vmem>>, %arg4: memref<1x1x1x64xi32, #tpu.memory_space<vmem>>, %arg5: memref<8x1xf32, #tpu.memory_space<vmem>>, %arg6: memref<8x8xf32, #tpu.memory_space<vmem>>, %arg7: memref<8x1xf32, #tpu.memory_space<vmem>>, %arg8: memref<16x8xf32, #tpu.memory_space<vmem>>, %arg9: memref<16x1xf32, #tpu.memory_space<vmem>>, %arg10: memref<1x16x16xf32, #tpu.memory_space<vmem>>) attributes {dimension_semantics = [#tpu.dimension_semantics<parallel>, #tpu.dimension_semantics<parallel>], iteration_bounds = array<i64: 2, 1>, scalar_prefetch = 0 : i64, scratch_operands = 0 : i64, tpu.core_type = #tpu.core_type<tc>, window_params = [{transform_indices = @transform_0, window_bounds = array<i64: 1, 8, 16>}, {transform_indices = @transform_1, window_bounds = array<i64: 1, 8, 16>}, {transform_indices = @transform_2, window_bounds = array<i64: 1, 1, 1, 64>}, {pipeline_mode = #tpu.pipeline_mode<synchronous>, transform_indices = @transform_3, window_bounds = array<i64: 8, 1>}, {pipeline_mode = #tpu.pipeline_mode<synchronous>, transform_indices = @transform_4, window_bounds = array<i64: 8, 8>}, {pipeline_mode = #tpu.pipeline_mode<synchronous>, transform_indices = @transform_5, window_bounds = array<i64: 8, 1>}, {pipeline_mode = #tpu.pipeline_mode<synchronous>, transform_indices = @transform_6, window_bounds = array<i64: 16, 8>}, {pipeline_mode = #tpu.pipeline_mode<synchronous>, transform_indices = @transform_7, window_bounds = array<i64: 16, 1>}, {transform_indices = @transform_8, window_bounds = array<i64: 1, 16, 16>}]} {
    %c0 = arith.constant 0 : index
    %c0_0 = arith.constant 0 : index
    %c0_1 = arith.constant 0 : index
    %c0_2 = arith.constant 0 : index
    %0 = vector.load %arg4[%c0, %c0_0, %c0_1, %c0_2] : memref<1x1x1x64xi32, #tpu.memory_space<vmem>>, vector<1x1x1x64xi32>
    %1 = vector.shape_cast %0 : vector<1x1x1x64xi32> to vector<1x64xi32>
    %2 = tpu.iota {dimensions = array<i32: 0>} : vector<16x64xi32>
    %3 = vector.broadcast %1 : vector<1x64xi32> to vector<16x64xi32>
    %4 = arith.cmpi eq, %3, %2 : vector<16x64xi32>
    %5 = arith.extui %4 : vector<16x64xi1> to vector<16x64xi32>
    %6 = arith.sitofp %5 : vector<16x64xi32> to vector<16x64xf32>
    %7 = arith.truncf %6 : vector<16x64xf32> to vector<16x64xbf16>
    %c0_3 = arith.constant 0 : index
    %c0_4 = arith.constant 0 : index
    %c0_5 = arith.constant 0 : index
    %8 = vector.load %arg2[%c0_3, %c0_4, %c0_5] : memref<1x8x16xbf16, #tpu.memory_space<vmem>>, vector<1x8x16xbf16>
    %9 = vector.shape_cast %8 : vector<1x8x16xbf16> to vector<8x16xbf16>
    %cst = arith.constant dense<0.000000e+00> : vector<8x64xf32>
    %10 = tpu.matmul %9, %7, %cst {dimension_numbers = #tpu.dot_dimension_numbers<[1], [0], [0], [1], [0, 0, 1, 1], [], []>} : vector<8x16xbf16>, vector<16x64xbf16>, vector<8x64xf32> -> vector<8x64xf32>
    %c0_6 = arith.constant 0 : index
    %c0_7 = arith.constant 0 : index
    %c0_8 = arith.constant 0 : index
    %11 = vector.load %arg3[%c0_6, %c0_7, %c0_8] : memref<1x8x16xf32, #tpu.memory_space<vmem>>, vector<1x8x16xf32>
    %12 = vector.shape_cast %11 : vector<1x8x16xf32> to vector<8x16xf32>
    %c0_9 = arith.constant 0 : index
    %c0_10 = arith.constant 0 : index
    %13 = vector.load %arg5[%c0_9, %c0_10] : memref<8x1xf32, #tpu.memory_space<vmem>>, vector<8x1xf32>
    %14 = vector.broadcast %13 : vector<8x1xf32> to vector<8x16xf32>
    %15 = arith.addf %12, %14 : vector<8x16xf32>
    %c0_11 = arith.constant 0 : index
    %c0_12 = arith.constant 0 : index
    %16 = vector.load %arg6[%c0_11, %c0_12] : memref<8x8xf32, #tpu.memory_space<vmem>>, vector<8x8xf32>
    %17 = vector.extract_strided_slice %10 {offsets = [0, 0], sizes = [8, 16], strides = [1, 1]} : vector<8x64xf32> to vector<8x16xf32>
    %18 = arith.subf %15, %17 : vector<8x16xf32>
    %cst_13 = arith.constant 0.000000e+00 : f32
    %19 = vector.broadcast %cst_13 : f32 to vector<8x16xf32>
    %20 = arith.maximumf %18, %19 : vector<8x16xf32>
    %cst_14 = arith.constant dense<0.000000e+00> : vector<8x16xf32>
    %21 = tpu.matmul %16, %20, %cst_14 {dimension_numbers = #tpu.dot_dimension_numbers<[1], [0], [0], [1], [0, 0, 1, 1], [], []>} : vector<8x8xf32>, vector<8x16xf32>, vector<8x16xf32> -> vector<8x16xf32>
    %22 = vector.extract_strided_slice %10 {offsets = [0, 16], sizes = [8, 16], strides = [1, 1]} : vector<8x64xf32> to vector<8x16xf32>
    %23 = arith.subf %15, %22 : vector<8x16xf32>
    %cst_15 = arith.constant 0.000000e+00 : f32
    %24 = vector.broadcast %cst_15 : f32 to vector<8x16xf32>
    %25 = arith.maximumf %23, %24 : vector<8x16xf32>
    %cst_16 = arith.constant dense<0.000000e+00> : vector<8x16xf32>
    %26 = tpu.matmul %16, %25, %cst_16 {dimension_numbers = #tpu.dot_dimension_numbers<[1], [0], [0], [1], [0, 0, 1, 1], [], []>} : vector<8x8xf32>, vector<8x16xf32>, vector<8x16xf32> -> vector<8x16xf32>
    %27 = arith.maximumf %21, %26 : vector<8x16xf32>
    %28 = vector.extract_strided_slice %10 {offsets = [0, 32], sizes = [8, 16], strides = [1, 1]} : vector<8x64xf32> to vector<8x16xf32>
    %29 = arith.subf %15, %28 : vector<8x16xf32>
    %cst_17 = arith.constant 0.000000e+00 : f32
    %30 = vector.broadcast %cst_17 : f32 to vector<8x16xf32>
    %31 = arith.maximumf %29, %30 : vector<8x16xf32>
    %cst_18 = arith.constant dense<0.000000e+00> : vector<8x16xf32>
    %32 = tpu.matmul %16, %31, %cst_18 {dimension_numbers = #tpu.dot_dimension_numbers<[1], [0], [0], [1], [0, 0, 1, 1], [], []>} : vector<8x8xf32>, vector<8x16xf32>, vector<8x16xf32> -> vector<8x16xf32>
    %33 = arith.maximumf %27, %32 : vector<8x16xf32>
    %34 = vector.extract_strided_slice %10 {offsets = [0, 48], sizes = [8, 16], strides = [1, 1]} : vector<8x64xf32> to vector<8x16xf32>
    %35 = arith.subf %15, %34 : vector<8x16xf32>
    %cst_19 = arith.constant 0.000000e+00 : f32
    %36 = vector.broadcast %cst_19 : f32 to vector<8x16xf32>
    %37 = arith.maximumf %35, %36 : vector<8x16xf32>
    %cst_20 = arith.constant dense<0.000000e+00> : vector<8x16xf32>
    %38 = tpu.matmul %16, %37, %cst_20 {dimension_numbers = #tpu.dot_dimension_numbers<[1], [0], [0], [1], [0, 0, 1, 1], [], []>} : vector<8x8xf32>, vector<8x16xf32>, vector<8x16xf32> -> vector<8x16xf32>
    %39 = arith.maximumf %33, %38 : vector<8x16xf32>
    %c0_21 = arith.constant 0 : index
    %c0_22 = arith.constant 0 : index
    %40 = vector.load %arg7[%c0_21, %c0_22] : memref<8x1xf32, #tpu.memory_space<vmem>>, vector<8x1xf32>
    %41 = vector.broadcast %40 : vector<8x1xf32> to vector<8x16xf32>
    %42 = arith.addf %39, %41 : vector<8x16xf32>
    %c0_23 = arith.constant 0 : index
    %c0_24 = arith.constant 0 : index
    %43 = vector.load %arg8[%c0_23, %c0_24] : memref<16x8xf32, #tpu.memory_space<vmem>>, vector<16x8xf32>
    %cst_25 = arith.constant dense<0.000000e+00> : vector<16x16xf32>
    %44 = tpu.matmul %43, %42, %cst_25 {dimension_numbers = #tpu.dot_dimension_numbers<[1], [0], [0], [1], [0, 0, 1, 1], [], []>} : vector<16x8xf32>, vector<8x16xf32>, vector<16x16xf32> -> vector<16x16xf32>
    %c0_26 = arith.constant 0 : index
    %c0_27 = arith.constant 0 : index
    %45 = vector.load %arg9[%c0_26, %c0_27] : memref<16x1xf32, #tpu.memory_space<vmem>>, vector<16x1xf32>
    %46 = vector.broadcast %45 : vector<16x1xf32> to vector<16x16xf32>
    %47 = arith.addf %44, %46 : vector<16x16xf32>
    %c0_28 = arith.constant 0 : index
    %c0_29 = arith.constant 0 : index
    %c0_30 = arith.constant 0 : index
    %48 = vector.load %arg10[%c0_28, %c0_29, %c0_30] : memref<1x16x16xf32, #tpu.memory_space<vmem>>, vector<1x16x16xf32>
    %49 = vector.shape_cast %48 : vector<1x16x16xf32> to vector<16x16xf32>
    %50 = vector.shape_cast %47 : vector<16x16xf32> to vector<1x16x16xf32>
    tpu.vector_store %arg10[%c0_28, %c0_29, %c0_30], %50 {strides = array<i32>} : memref<1x16x16xf32, #tpu.memory_space<vmem>>, vector<1x16x16xf32>,
    return
  }
  func.func @transform_0(%arg0: i32, %arg1: i32) -> (i32, i32, i32) {
    %c0_i32 = arith.constant 0 : i32
    %c0_i32_0 = arith.constant 0 : i32
    %c0_i32_1 = arith.constant 0 : i32
    return %arg0, %c0_i32, %c0_i32_0 : i32, i32, i32
  }
  func.func @transform_1(%arg0: i32, %arg1: i32) -> (i32, i32, i32) {
    %c0_i32 = arith.constant 0 : i32
    %c0_i32_0 = arith.constant 0 : i32
    return %arg0, %c0_i32, %arg1 : i32, i32, i32
  }
  func.func @transform_2(%arg0: i32, %arg1: i32) -> (i32, i32, i32, i32) {
    %c0_i32 = arith.constant 0 : i32
    %c0_i32_0 = arith.constant 0 : i32
    %c0_i32_1 = arith.constant 0 : i32
    return %arg0, %arg1, %c0_i32, %c0_i32_0 : i32, i32, i32, i32
  }
  func.func @transform_3(%arg0: i32, %arg1: i32) -> (i32, i32) {
    %c0_i32 = arith.constant 0 : i32
    %c0_i32_0 = arith.constant 0 : i32
    %c0_i32_1 = arith.constant 0 : i32
    return %c0_i32, %c0_i32_0 : i32, i32
  }
  func.func @transform_4(%arg0: i32, %arg1: i32) -> (i32, i32) {
    %c0_i32 = arith.constant 0 : i32
    %c0_i32_0 = arith.constant 0 : i32
    %c0_i32_1 = arith.constant 0 : i32
    return %c0_i32, %c0_i32_0 : i32, i32
  }
  func.func @transform_5(%arg0: i32, %arg1: i32) -> (i32, i32) {
    %c0_i32 = arith.constant 0 : i32
    %c0_i32_0 = arith.constant 0 : i32
    %c0_i32_1 = arith.constant 0 : i32
    return %c0_i32, %c0_i32_0 : i32, i32
  }
  func.func @transform_6(%arg0: i32, %arg1: i32) -> (i32, i32) {
    %c0_i32 = arith.constant 0 : i32
    %c0_i32_0 = arith.constant 0 : i32
    %c0_i32_1 = arith.constant 0 : i32
    return %c0_i32, %c0_i32_0 : i32, i32
  }
  func.func @transform_7(%arg0: i32, %arg1: i32) -> (i32, i32) {
    %c0_i32 = arith.constant 0 : i32
    %c0_i32_0 = arith.constant 0 : i32
    %c0_i32_1 = arith.constant 0 : i32
    return %c0_i32, %c0_i32_0 : i32, i32
  }
  func.func @transform_8(%arg0: i32, %arg1: i32) -> (i32, i32, i32) {
    %c0_i32 = arith.constant 0 : i32
    %c0_i32_0 = arith.constant 0 : i32
    return %arg0, %c0_i32, %arg1 : i32, i32, i32
  }
}

</mosaic_0001>

<llo_original>
// kernel: tpu_custom_call.1
$region0: #{tpu_custom_call.1}
  #allocation0 [shape = 'u32[]', space=smem, size = 0x4, offset = 0x4, fixed_abs, tag = 'smem constant byte address 0x4 - core index']
  #allocation1 [shape = 'u32[144,128]{1,0:T(1,128)}', space=vmem, size = 0x12000, scoped, tag = 'internal scratch']
  %s0 = inlined_call_operand.vmem [shape: bf16[2,8,16], index: 0, kind: input, shape index: {}]
  %s1 = inlined_call_operand.vmem [shape: f32[2,8,16], index: 1, kind: input, shape index: {}]
  %s2 = inlined_call_operand.vmem [shape: s32[2,1,1,64], index: 2, kind: input, shape index: {}]
  %s3 = inlined_call_operand.vmem [shape: f32[8,1], index: 3, kind: input, shape index: {}]
  %s4 = inlined_call_operand.vmem [shape: f32[8,8], index: 4, kind: input, shape index: {}]
  %s5 = inlined_call_operand.vmem [shape: f32[8,1], index: 5, kind: input, shape index: {}]
  %s6 = inlined_call_operand.vmem [shape: f32[16,8], index: 6, kind: input, shape index: {}]
  %s7 = inlined_call_operand.vmem [shape: f32[16,1], index: 7, kind: input, shape index: {}]
  %s8 = inlined_call_operand.hbm [shape: f32[2,16,16], index: 8, kind: output, shape index: {}]
  %s9 = sld [smem:[#allocation0]]
  $region65: #{tpu_custom_call.1} parent=0
    _
  %s11 = ssub.s32 1, %s9
  %s12 = scalar_select 0, %s11, %s9
  $region1: #{tpu_custom_call.1} parent=0
    #allocation2 [shape = 'u8[16384]{0}', space=vmem, size = 0x4000, scoped, tag = 'output window, operand 0']
    #allocation3 [shape = 's32[2]{0}', space=sflag, size = 0x8, scoped, tag = 'scoped memory for tpu_custom_call.1']
    %13 = vsyncpa [#allocation3], 0
    %s14 = scalar_lea.sflag [#allocation3], 1
    %15 = vsyncpa %s14, 0
    loop: start=0, step=1, limit=4
    $region2: #{tpu_custom_call.1} parent=1 // loop_pre_header
      _
    $region3: #{tpu_custom_call.1} parent=1 // loop_header
      %s17 = sphi 0, %s21
      %p18 = scmp.ge.s32.totalorder %s17, 4
      %s24 = sphi 0, %s36
      %s25 = sphi 0, %s32
      %s26 = sphi 0, %s24
      %s27 = sphi 0, %s25
      %s28 = sphi 0, %s26
      %s29 = sphi 0, %s27
      %s39 = sphi 0, %s41
      %s42 = sphi 0, %s39
      %s43 = sphi 0, %s42
      %s59 = sphi 0, %s43
      %s67 = sphi 0, %s69
      %s70 = sphi 0, %s67
      %s71 = sphi 0, %s70
      %s87 = sphi 0, %s71
      %s95 = sphi 0, %s97
      %s98 = sphi 0, %s95
      %s99 = sphi 0, %s98
      %s115 = sphi 0, %s99
      %s119 = sphi 0, %s119
      %s121 = sphi 0, %s119
      %s122 = sphi 0, %s121
      %s136 = sphi 0, %s122
      %s140 = sphi 0, %s140
      %s142 = sphi 0, %s140
      %s143 = sphi 0, %s142
      %s157 = sphi 0, %s143
      %s161 = sphi 0, %s161
      %s163 = sphi 0, %s161
      %s164 = sphi 0, %s163
      %s178 = sphi 0, %s164
      %s182 = sphi 0, %s182
      %s184 = sphi 0, %s182
      %s185 = sphi 0, %s184
      %s199 = sphi 0, %s185
      %s203 = sphi 0, %s203
      %s205 = sphi 0, %s203
      %s206 = sphi 0, %s205
      %s220 = sphi 0, %s206
      %s228 = sphi 0, %s230
      %s231 = sphi 0, %s228
      %s232 = sphi 0, %s231
      %s248 = sphi 0, %s232
    $region4: #{tpu_custom_call.1} parent=1 // loop_header_branch
      %20 = sbr.rel (%p18) target = $region8
    $region5: #{tpu_custom_call.1} parent=1 // loop_body
      %s22 = ssub.s32 %s17, 1
      %s23 = ssub.s32 %s17, 2
      %s30 = sadd.s32 1, %s25
      %p31 = scmp.ge.s32.totalorder %s30, 1
      %s32 = scalar_select %p31, 0, %s30
      %s33 = sadd.s32 1, %s24
      %s34 = scalar_select %p31, %s33, %s24
      %p35 = scmp.ge.s32.totalorder %s34, 2
      %s36 = scalar_select %p35, 0, %s34
      %s37 = ssub.s32 %s24, %s36
      %p38 = scmp.eq.s32.totalorder %s37, 0
      %s40 = sadd.s32 %s39, 1
      %s41 = scalar_select %p38, %s39, %s40
      %p44 = pneg %p38
      %p45 = scmp.eq.s32.totalorder %s17, 1
      %p46 = por %p44, %p45
      %p47 = scmp.ne.s32.totalorder %s39, %s42
      %p48 = scmp.eq.s32.totalorder %s17, 0
      %p49 = por %p47, %p48
      %p50 = scmp.ne.s32.totalorder %s39, %s42
      %p51 = scmp.eq.s32.totalorder %s22, 1
      %p52 = por %p50, %p51
      %p53 = scmp.ne.s32.totalorder %s42, %s43
      %p54 = scmp.eq.s32.totalorder %s22, 0
      %p55 = por %p53, %p54
      %p56 = scmp.ne.s32.totalorder %s42, %s43
      %p57 = scmp.eq.s32.totalorder %s23, 1
      %p58 = por %p56, %p57
      %p60 = scmp.ne.s32.totalorder %s43, %s59
      %p61 = scmp.eq.s32.totalorder %s23, 0
      %p62 = por %p60, %p61
      %s63 = ssub.s32 %s24, %s36
      %s64 = ssub.s32 %s25, %s32
      %s65 = sor.u32 %s63, %s64
      %p66 = scmp.eq.s32.totalorder %s65, 0
      %s68 = sadd.s32 %s67, 1
      %s69 = scalar_select %p66, %s67, %s68
      %p72 = pneg %p66
      %p73 = scmp.eq.s32.totalorder %s17, 1
      %p74 = por %p72, %p73
      %p75 = scmp.ne.s32.totalorder %s67, %s70
      %p76 = scmp.eq.s32.totalorder %s17, 0
      %p77 = por %p75, %p76
      %p78 = scmp.ne.s32.totalorder %s67, %s70
      %p79 = scmp.eq.s32.totalorder %s22, 1
      %p80 = por %p78, %p79
      %p81 = scmp.ne.s32.totalorder %s70, %s71
      %p82 = scmp.eq.s32.totalorder %s22, 0
      %p83 = por %p81, %p82
      %p84 = scmp.ne.s32.totalorder %s70, %s71
      %p85 = scmp.eq.s32.totalorder %s23, 1
      %p86 = por %p84, %p85
      %p88 = scmp.ne.s32.totalorder %s71, %s87
      %p89 = scmp.eq.s32.totalorder %s23, 0
      %p90 = por %p88, %p89
      %s91 = ssub.s32 %s24, %s36
      %s92 = ssub.s32 %s25, %s32
      %s93 = sor.u32 %s91, %s92
      %p94 = scmp.eq.s32.totalorder %s93, 0
      %s96 = sadd.s32 %s95, 1
      %s97 = scalar_select %p94, %s95, %s96
      %p100 = pneg %p94
      %p101 = scmp.eq.s32.totalorder %s17, 1
      %p102 = por %p100, %p101
      %p103 = scmp.ne.s32.totalorder %s95, %s98
      %p104 = scmp.eq.s32.totalorder %s17, 0
      %p105 = por %p103, %p104
      %p106 = scmp.ne.s32.totalorder %s95, %s98
      %p107 = scmp.eq.s32.totalorder %s22, 1
      %p108 = por %p106, %p107
      %p109 = scmp.ne.s32.totalorder %s98, %s99
      %p110 = scmp.eq.s32.totalorder %s22, 0
      %p111 = por %p109, %p110
      %p112 = scmp.ne.s32.totalorder %s98, %s99
      %p113 = scmp.eq.s32.totalorder %s23, 1
      %p114 = por %p112, %p113
      %p116 = scmp.ne.s32.totalorder %s99, %s115
      %p117 = scmp.eq.s32.totalorder %s23, 0
      %p118 = por %p116, %p117
      %s120 = sadd.s32 %s119, 1
      %p123 = scmp.eq.s32.totalorder %s17, 1
      %p124 = scmp.ne.s32.totalorder %s119, %s121
      %p125 = scmp.eq.s32.totalorder %s17, 0
      %p126 = por %p124, %p125
      %p127 = scmp.ne.s32.totalorder %s119, %s121
      %p128 = scmp.eq.s32.totalorder %s22, 1
      %p129 = por %p127, %p128
      %p130 = scmp.ne.s32.totalorder %s121, %s122
      %p131 = scmp.eq.s32.totalorder %s22, 0
      %p132 = por %p130, %p131
      %p133 = scmp.ne.s32.totalorder %s121, %s122
      %p134 = scmp.eq.s32.totalorder %s23, 1
      %p135 = por %p133, %p134
      %p137 = scmp.ne.s32.totalorder %s122, %s136
      %p138 = scmp.eq.s32.totalorder %s23, 0
      %p139 = por %p137, %p138
      %s141 = sadd.s32 %s140, 1
      %p144 = scmp.eq.s32.totalorder %s17, 1
      %p145 = scmp.ne.s32.totalorder %s140, %s142
      %p146 = scmp.eq.s32.totalorder %s17, 0
      %p147 = por %p145, %p146
      %p148 = scmp.ne.s32.totalorder %s140, %s142
      %p149 = scmp.eq.s32.totalorder %s22, 1
      %p150 = por %p148, %p149
      %p151 = scmp.ne.s32.totalorder %s142, %s143
      %p152 = scmp.eq.s32.totalorder %s22, 0
      %p153 = por %p151, %p152
      %p154 = scmp.ne.s32.totalorder %s142, %s143
      %p155 = scmp.eq.s32.totalorder %s23, 1
      %p156 = por %p154, %p155
      %p158 = scmp.ne.s32.totalorder %s143, %s157
      %p159 = scmp.eq.s32.totalorder %s23, 0
      %p160 = por %p158, %p159
      %s162 = sadd.s32 %s161, 1
      %p165 = scmp.eq.s32.totalorder %s17, 1
      %p166 = scmp.ne.s32.totalorder %s161, %s163
      %p167 = scmp.eq.s32.totalorder %s17, 0
      %p168 = por %p166, %p167
      %p169 = scmp.ne.s32.totalorder %s161, %s163
      %p170 = scmp.eq.s32.totalorder %s22, 1
      %p171 = por %p169, %p170
      %p172 = scmp.ne.s32.totalorder %s163, %s164
      %p173 = scmp.eq.s32.totalorder %s22, 0
      %p174 = por %p172, %p173
      %p175 = scmp.ne.s32.totalorder %s163, %s164
      %p176 = scmp.eq.s32.totalorder %s23, 1
      %p177 = por %p175, %p176
      %p179 = scmp.ne.s32.totalorder %s164, %s178
      %p180 = scmp.eq.s32.totalorder %s23, 0
      %p181 = por %p179, %p180
      %s183 = sadd.s32 %s182, 1
      %p186 = scmp.eq.s32.totalorder %s17, 1
      %p187 = scmp.ne.s32.totalorder %s182, %s184
      %p188 = scmp.eq.s32.totalorder %s17, 0
      %p189 = por %p187, %p188
      %p190 = scmp.ne.s32.totalorder %s182, %s184
      %p191 = scmp.eq.s32.totalorder %s22, 1
      %p192 = por %p190, %p191
      %p193 = scmp.ne.s32.totalorder %s184, %s185
      %p194 = scmp.eq.s32.totalorder %s22, 0
      %p195 = por %p193, %p194
      %p196 = scmp.ne.s32.totalorder %s184, %s185
      %p197 = scmp.eq.s32.totalorder %s23, 1
      %p198 = por %p196, %p197
      %p200 = scmp.ne.s32.totalorder %s185, %s199
      %p201 = scmp.eq.s32.totalorder %s23, 0
      %p202 = por %p200, %p201
      %s204 = sadd.s32 %s203, 1
      %p207 = scmp.eq.s32.totalorder %s17, 1
      %p208 = scmp.ne.s32.totalorder %s203, %s205
      %p209 = scmp.eq.s32.totalorder %s17, 0
      %p210 = por %p208, %p209
      %p211 = scmp.ne.s32.totalorder %s203, %s205
      %p212 = scmp.eq.s32.totalorder %s22, 1
      %p213 = por %p211, %p212
      %p214 = scmp.ne.s32.totalorder %s205, %s206
      %p215 = scmp.eq.s32.totalorder %s22, 0
      %p216 = por %p214, %p215
      %p217 = scmp.ne.s32.totalorder %s205, %s206
      %p218 = scmp.eq.s32.totalorder %s23, 1
      %p219 = por %p217, %p218
      %p221 = scmp.ne.s32.totalorder %s206, %s220
      %p222 = scmp.eq.s32.totalorder %s23, 0
      %p223 = por %p221, %p222
      %s224 = ssub.s32 %s24, %s36
      %s225 = ssub.s32 %s25, %s32
      %s226 = sor.u32 %s224, %s225
      %p227 = scmp.eq.s32.totalorder %s226, 0
      %s229 = sadd.s32 %s228, 1
      %s230 = scalar_select %p227, %s228, %s229
      %p233 = pneg %p227
      %p234 = scmp.eq.s32.totalorder %s17, 1
      %p235 = por %p233, %p234
      %p236 = scmp.ne.s32.totalorder %s228, %s231
      %p237 = scmp.eq.s32.totalorder %s17, 0
      %p238 = por %p236, %p237
      %p239 = scmp.ne.s32.totalorder %s228, %s231
      %p240 = scmp.eq.s32.totalorder %s22, 1
      %p241 = por %p239, %p240
      %p242 = scmp.ne.s32.totalorder %s231, %s232
      %p243 = scmp.eq.s32.totalorder %s22, 0
      %p244 = por %p242, %p243
      %p245 = scmp.ne.s32.totalorder %s231, %s232
      %p246 = scmp.eq.s32.totalorder %s23, 1
      %p247 = por %p245, %p246
      %p249 = scmp.ne.s32.totalorder %s232, %s248
      %p250 = scmp.eq.s32.totalorder %s23, 0
      %p251 = por %p249, %p250
      %p252 = scmp.le.s32.totalorder 1, %s17
      %p253 = scmp.lt.s32.totalorder %s17, 3
      %p254 = pnand %p252, %p253
      %p255 = pneg %p254
      // Predicated region
      $region9: #{tpu_custom_call.1} parent=5 // pred_check
        _
      $region10: #{tpu_custom_call.1} parent=5 // pred_check_branch
        %257 = sbr.rel (%p254) target = $region12
      $region11: #{tpu_custom_call.1} parent=5 // pred_region
        %s258 = ssub.s32 %s17, 1
        // Predicated region
        $region13: #{tpu_custom_call.1} parent=11 // pred_check
          %p259 = pneg %p132
        $region14: #{tpu_custom_call.1} parent=11 // pred_check_branch
          %261 = sbr.rel (%p259) target = $region16
        $region15: #{tpu_custom_call.1} parent=11 // pred_region
          _
        $region16: #{tpu_custom_call.1} parent=11 // pred_fallthru
          _
        // Predicated region
        $region17: #{tpu_custom_call.1} parent=11 // pred_check
          %p262 = pneg %p153
        $region18: #{tpu_custom_call.1} parent=11 // pred_check_branch
          %264 = sbr.rel (%p262) target = $region20
        $region19: #{tpu_custom_call.1} parent=11 // pred_region
          _
        $region20: #{tpu_custom_call.1} parent=11 // pred_fallthru
          _
        // Predicated region
        $region21: #{tpu_custom_call.1} parent=11 // pred_check
          %p265 = pneg %p174
        $region22: #{tpu_custom_call.1} parent=11 // pred_check_branch
          %267 = sbr.rel (%p265) target = $region24
        $region23: #{tpu_custom_call.1} parent=11 // pred_region
          _
        $region24: #{tpu_custom_call.1} parent=11 // pred_fallthru
          _
        // Predicated region
        $region25: #{tpu_custom_call.1} parent=11 // pred_check
          %p268 = pneg %p195
        $region26: #{tpu_custom_call.1} parent=11 // pred_check_branch
          %270 = sbr.rel (%p268) target = $region28
        $region27: #{tpu_custom_call.1} parent=11 // pred_region
          _
        $region28: #{tpu_custom_call.1} parent=11 // pred_fallthru
          _
        // Predicated region
        $region29: #{tpu_custom_call.1} parent=11 // pred_check
          %p271 = pneg %p216
        $region30: #{tpu_custom_call.1} parent=11 // pred_check_branch
          %273 = sbr.rel (%p271) target = $region32
        $region31: #{tpu_custom_call.1} parent=11 // pred_region
          _
        $region32: #{tpu_custom_call.1} parent=11 // pred_fallthru
          _
      $region12: #{tpu_custom_call.1} parent=5 // pred_fallthru
        _
      %p274 = scmp.lt.s32.totalorder %s17, 2
      // Predicated region
      $region33: #{tpu_custom_call.1} parent=5 // pred_check
        %p275 = pneg %p274
      $region34: #{tpu_custom_call.1} parent=5 // pred_check_branch
        %277 = sbr.rel (%p275) target = $region36
      $region35: #{tpu_custom_call.1} parent=5 // pred_region
        // Predicated region
        $region37: #{tpu_custom_call.1} parent=35 // pred_check
          %p278 = pneg %p49
        $region38: #{tpu_custom_call.1} parent=35 // pred_check_branch
          %280 = sbr.rel (%p278) target = $region40
        $region39: #{tpu_custom_call.1} parent=35 // pred_region
          %p281 = scmp.lt.s32.totalorder %s24, 1
          %s282 = scalar_select %p281, %s24, 1
          %s283 = smul.addr %s282, 4
          %s284 = scalar_lea.vmem %s0, %s283
        $region40: #{tpu_custom_call.1} parent=35 // pred_fallthru
          _
        // Predicated region
        $region41: #{tpu_custom_call.1} parent=35 // pred_check
          %p285 = pneg %p77
        $region42: #{tpu_custom_call.1} parent=35 // pred_check_branch
          %287 = sbr.rel (%p285) target = $region44
        $region43: #{tpu_custom_call.1} parent=35 // pred_region
          %p288 = scmp.lt.s32.totalorder %s24, 1
          %s289 = scalar_select %p288, %s24, 1
          %p290 = scmp.lt.s32.totalorder %s25, 0
          %s291 = scalar_select %p290, %s25, 0
          %s292 = sadd.s32 %s291, %s289
          %s293 = smul.addr %s292, 8
          %s294 = scalar_lea.vmem %s1, %s293
        $region44: #{tpu_custom_call.1} parent=35 // pred_fallthru
          _
        // Predicated region
        $region45: #{tpu_custom_call.1} parent=35 // pred_check
          %p295 = pneg %p105
        $region46: #{tpu_custom_call.1} parent=35 // pred_check_branch
          %297 = sbr.rel (%p295) target = $region48
        $region47: #{tpu_custom_call.1} parent=35 // pred_region
          %p298 = scmp.lt.s32.totalorder %s24, 1
          %s299 = scalar_select %p298, %s24, 1
          %p300 = scmp.lt.s32.totalorder %s25, 0
          %s301 = scalar_select %p300, %s25, 0
          %s302 = sadd.s32 %s301, %s299
          %s303 = scalar_lea.vmem %s2, %s302
        $region48: #{tpu_custom_call.1} parent=35 // pred_fallthru
          _
      $region36: #{tpu_custom_call.1} parent=5 // pred_fallthru
        _
      %p304 = scmp.le.s32.totalorder 1, %s17
      %p305 = scmp.lt.s32.totalorder %s17, 3
      %p306 = pnand %p304, %p305
      %p307 = pneg %p306
      // Predicated region
      $region49: #{tpu_custom_call.1} parent=5 // pred_check
        _
      $region50: #{tpu_custom_call.1} parent=5 // pred_check_branch
        %309 = sbr.rel (%p306) target = $region52
      $region51: #{tpu_custom_call.1} parent=5 // pred_region
        %s310 = ssub.s32 %s17, 1
        %p311 = scmp.lt.s32.totalorder %s26, 1
        %s312 = scalar_select %p311, %s26, 1
        %s313 = smul.addr %s312, 4
        %s314 = scalar_lea.vmem %s0, %s313
        %p315 = pneg %p55
        %p316 = pneg %p52
        %p317 = scmp.lt.s32.totalorder %s26, 1
        %s318 = scalar_select %p317, %s26, 1
        %p319 = scmp.lt.s32.totalorder %s27, 0
        %s320 = scalar_select %p319, %s27, 0
        %s321 = sadd.s32 %s320, %s318
        %s322 = smul.addr %s321, 8
        %s323 = scalar_lea.vmem %s1, %s322
        %p324 = pneg %p83
        %p325 = pneg %p80
        %p326 = scmp.lt.s32.totalorder %s26, 1
        %s327 = scalar_select %p326, %s26, 1
        %p328 = scmp.lt.s32.totalorder %s27, 0
        %s329 = scalar_select %p328, %s27, 0
        %s330 = sadd.s32 %s329, %s327
        %s331 = scalar_lea.vmem %s2, %s330
        %p332 = pneg %p111
        %p333 = pneg %p108
        %p334 = pneg %p132
        %p335 = pneg %p129
        %p336 = pneg %p153
        %p337 = pneg %p150
        %p338 = pneg %p174
        %p339 = pneg %p171
        %p340 = pneg %p195
        %p341 = pneg %p192
        %p342 = pneg %p216
        %p343 = pneg %p213
        %p344 = pneg %p244
        %p345 = pneg %p241
        %s346 = sand.u32 %s231, 1
        %s347 = scalar_lea.sflag [#allocation3], %s346
        %s348 = sand.u32 %s231, 1
        %s349 = smul.addr %s348, 16
        %s350 = scalar_lea.vmem [#allocation2], %s349
        %p351 = scmp.lt.s32.totalorder %s26, 1
        %s352 = scalar_select %p351, %s26, 1
        %s353 = smul.addr %s352, 4
        %s354 = scalar_lea.vmem %s0, %s353
        %p355 = scmp.lt.s32.totalorder %s26, 1
        %s356 = scalar_select %p355, %s26, 1
        %p357 = scmp.lt.s32.totalorder %s27, 0
        %s358 = scalar_select %p357, %s27, 0
        %s359 = sadd.s32 %s358, %s356
        %s360 = smul.addr %s359, 8
        %s361 = scalar_lea.vmem %s1, %s360
        %p362 = scmp.lt.s32.totalorder %s26, 1
        %s363 = scalar_select %p362, %s26, 1
        %p364 = scmp.lt.s32.totalorder %s27, 0
        %s365 = scalar_select %p364, %s27, 0
        %s366 = sadd.s32 %s365, %s363
        %s367 = scalar_lea.vmem %s2, %s366
        %v369 = vld [vmem:[%s367] sm:$0x1]
        %v370 = vlaneseq
        %v371 = vshrl.u32 %v370, 7
        %v372 = vadd.s32 %v371, 8
        %v373 = vlaneseq
        %v374 = vshrl.u32 %v373, 7
        %v375 = vsub.s32 0, %v374
        %v376 = vrot.slane %v369, %v375
        %vm377 = vcmp.eq.s32.totalorder %v376, %v371
        %vm378 = vcmp.eq.s32.totalorder %v376, %v372
        %v379 = vsel %vm377, 1, 0
        %v380 = vsel %vm378, 1, 0
        %v381 = vcvt.s32.f32 %v379
        %v382 = vcvt.s32.f32 %v380
        %v383 = vpack.c.bf16 %v382, %v381
        %v384 = vld [vmem:[%s354] sm:$0xf]
        %vm385 = vcmask 130048
        %v387 = vsel %vm385, %v384, 0
        %389 = vmatprep.subr.bf16.mxu0 0
        %390 = vmatpush1.bf16.msra.mxu0 %v383
        %391 = vmatprep.subr.bf16.mxu0 0
        %392 = vmatpush1.bf16.msra.mxu0 0
        %393 = vmatprep.subr.bf16.mxu0 0
        %394 = vmatpush1.bf16.msra.mxu0 0
        %395 = vmatprep.subr.bf16.mxu0 0
        %396 = vmatpush1.bf16.msra.mxu0 0
        %397 = vmatprep.subr.bf16.mxu0 0
        %398 = vmatpush1.bf16.msra.mxu0 0
        %399 = vmatprep.subr.bf16.mxu0 0
        %400 = vmatpush1.bf16.msra.mxu0 0
        %401 = vmatprep.subr.bf16.mxu0 0
        %402 = vmatpush1.bf16.msra.mxu0 0
        %403 = vmatprep.subr.bf16.mxu0 0
        %404 = vmatpush1.bf16.msra.mxu0 0
        %405 = vmatprep.subr.bf16.mxu0 0
        %406 = vmatpush1.bf16.msra.mxu0 0
        %407 = vmatprep.subr.bf16.mxu0 0
        %408 = vmatpush1.bf16.msra.mxu0 0
        %409 = vmatprep.subr.bf16.mxu0 0
        %410 = vmatpush1.bf16.msra.mxu0 0
        %411 = vmatprep.subr.bf16.mxu0 0
        %412 = vmatpush1.bf16.msra.mxu0 0
        %413 = vmatprep.subr.bf16.mxu0 0
        %414 = vmatpush1.bf16.msra.mxu0 0
        %415 = vmatprep.subr.bf16.mxu0 0
        %416 = vmatpush1.bf16.msra.mxu0 0
        %417 = vmatprep.subr.bf16.mxu0 0
        %418 = vmatpush1.bf16.msra.mxu0 0
        %419 = vmatprep.subr.bf16.mxu0 0
        %420 = vmatpush1.bf16.msra.mxu0 0
        %421 = vmatprep.mubr.bf16.mxu0 0
        %422 = vmatmul.mubr.bf16.gmra.mrb[0].mxu0 %v387
        %v423 = vpop.f32.mrb[0].mxu0
        %v424 = vadd.f32 0.0, %v423
        %v425 = vpop.f32.mrb[0].mxu0
        %v426 = vpop.f32.mrb[0].mxu0
        %v427 = vpop.f32.mrb[0].mxu0
        %428 = vdwg.mxu0
        %v429 = vld [vmem:[%s361] sm:$0xff]
        %v430 = vld [vmem:[%s3] sm:$0xff]
        %432 = vset.pattern.permute.xlu0 0
        %433 = vperm.xlu0 %432, %v430
        %v434 = vpop.permute.xlu0 %433
        %v436 = vadd.f32 %v429, %v434
        %v437 = vld [vmem:[%s4] sm:$0xff]
        %v438 = vsub.f32 %v436, %v424
        %v439 = vmax.f32 %v438, 0.0
        %vm440 = vcmask 64512
        %v442 = vsel %vm440, %v437, 0
        %444 = vmatprep.subr.mxu0 0.0
        %445 = vmatpush1.msra.mxu0 %v439
        %446 = vmatprep.subr.mxu0 0.0
        %447 = vmatpush1.msra.mxu0 0.0
        %448 = vmatprep.subr.mxu0 0.0
        %449 = vmatpush1.msra.mxu0 0.0
        %450 = vmatprep.subr.mxu0 0.0
        %451 = vmatpush1.msra.mxu0 0.0
        %452 = vmatprep.subr.mxu0 0.0
        %453 = vmatpush1.msra.mxu0 0.0
        %454 = vmatprep.subr.mxu0 0.0
        %455 = vmatpush1.msra.mxu0 0.0
        %456 = vmatprep.subr.mxu0 0.0
        %457 = vmatpush1.msra.mxu0 0.0
        %458 = vmatprep.subr.mxu0 0.0
        %459 = vmatpush1.msra.mxu0 0.0
        %460 = vmatprep.subr.mxu0 0.0
        %461 = vmatpush1.msra.mxu0 0.0
        %462 = vmatprep.subr.mxu0 0.0
        %463 = vmatpush1.msra.mxu0 0.0
        %464 = vmatprep.subr.mxu0 0.0
        %465 = vmatpush1.msra.mxu0 0.0
        %466 = vmatprep.subr.mxu0 0.0
        %467 = vmatpush1.msra.mxu0 0.0
        %468 = vmatprep.subr.mxu0 0.0
        %469 = vmatpush1.msra.mxu0 0.0
        %470 = vmatprep.subr.mxu0 0.0
        %471 = vmatpush1.msra.mxu0 0.0
        %472 = vmatprep.subr.mxu0 0.0
        %473 = vmatpush1.msra.mxu0 0.0
        %474 = vmatprep.subr.mxu0 0.0
        %475 = vmatpush1.msra.mxu0 0.0
        %476 = vmatprep.subr.mxu0 0.0
        %477 = vmatpush1.msra.mxu0 0.0
        %478 = vmatprep.subr.mxu0 0.0
        %479 = vmatpush1.msra.mxu0 0.0
        %480 = vmatprep.subr.mxu0 0.0
        %481 = vmatpush1.msra.mxu0 0.0
        %482 = vmatprep.subr.mxu0 0.0
        %483 = vmatpush1.msra.mxu0 0.0
        %484 = vmatprep.subr.mxu0 0.0
        %485 = vmatpush1.msra.mxu0 0.0
        %486 = vmatprep.subr.mxu0 0.0
        %487 = vmatpush1.msra.mxu0 0.0
        %488 = vmatprep.subr.mxu0 0.0
        %489 = vmatpush1.msra.mxu0 0.0
        %490 = vmatprep.subr.mxu0 0.0
        %491 = vmatpush1.msra.mxu0 0.0
        %492 = vmatprep.subr.mxu0 0.0
        %493 = vmatpush1.msra.mxu0 0.0
        %494 = vmatprep.subr.mxu0 0.0
        %495 = vmatpush1.msra.mxu0 0.0
        %496 = vmatprep.subr.mxu0 0.0
        %497 = vmatpush1.msra.mxu0 0.0
        %498 = vmatprep.subr.mxu0 0.0
        %499 = vmatpush1.msra.mxu0 0.0
        %500 = vmatprep.subr.mxu0 0.0
        %501 = vmatpush1.msra.mxu0 0.0
        %502 = vmatprep.subr.mxu0 0.0
        %503 = vmatpush1.msra.mxu0 0.0
        %504 = vmatprep.subr.mxu0 0.0
        %505 = vmatpush1.msra.mxu0 0.0
        %506 = vmatprep.subr.mxu0 0.0
        %507 = vmatpush1.msra.mxu0 0.0
        %508 = vmatprep.mubr.f32.mxu0 0.0
        %509 = vmatmul.mubr.f32.gmra.mrb[0].mxu0 %v442
        %v510 = vpop.f32.mrb[0].mxu0
        %v511 = vadd.f32 0.0, %v510
        %v512 = vpop.f32.mrb[0].mxu0
        %513 = vdwg.mxu0
        %515 = vrot.lane.b32.xlu0 %v424, 112
        %v516 = vpop.permute.xlu0 %515
        %v518 = vsub.f32 %v436, %v516
        %v519 = vmax.f32 %v518, 0.0
        %520 = vmatprep.subr.mxu0 0.0
        %521 = vmatpush1.msra.mxu0 %v519
        %522 = vmatprep.subr.mxu0 0.0
        %523 = vmatpush1.msra.mxu0 0.0
        %524 = vmatprep.subr.mxu0 0.0
        %525 = vmatpush1.msra.mxu0 0.0
        %526 = vmatprep.subr.mxu0 0.0
        %527 = vmatpush1.msra.mxu0 0.0
        %528 = vmatprep.subr.mxu0 0.0
        %529 = vmatpush1.msra.mxu0 0.0
        %530 = vmatprep.subr.mxu0 0.0
        %531 = vmatpush1.msra.mxu0 0.0
        %532 = vmatprep.subr.mxu0 0.0
        %533 = vmatpush1.msra.mxu0 0.0
        %534 = vmatprep.subr.mxu0 0.0
        %535 = vmatpush1.msra.mxu0 0.0
        %536 = vmatprep.subr.mxu0 0.0
        %537 = vmatpush1.msra.mxu0 0.0
        %538 = vmatprep.subr.mxu0 0.0
        %539 = vmatpush1.msra.mxu0 0.0
        %540 = vmatprep.subr.mxu0 0.0
        %541 = vmatpush1.msra.mxu0 0.0
        %542 = vmatprep.subr.mxu0 0.0
        %543 = vmatpush1.msra.mxu0 0.0
        %544 = vmatprep.subr.mxu0 0.0
        %545 = vmatpush1.msra.mxu0 0.0
        %546 = vmatprep.subr.mxu0 0.0
        %547 = vmatpush1.msra.mxu0 0.0
        %548 = vmatprep.subr.mxu0 0.0
        %549 = vmatpush1.msra.mxu0 0.0
        %550 = vmatprep.subr.mxu0 0.0
        %551 = vmatpush1.msra.mxu0 0.0
        %552 = vmatprep.subr.mxu0 0.0
        %553 = vmatpush1.msra.mxu0 0.0
        %554 = vmatprep.subr.mxu0 0.0
        %555 = vmatpush1.msra.mxu0 0.0
        %556 = vmatprep.subr.mxu0 0.0
        %557 = vmatpush1.msra.mxu0 0.0
        %558 = vmatprep.subr.mxu0 0.0
        %559 = vmatpush1.msra.mxu0 0.0
        %560 = vmatprep.subr.mxu0 0.0
        %561 = vmatpush1.msra.mxu0 0.0
        %562 = vmatprep.subr.mxu0 0.0
        %563 = vmatpush1.msra.mxu0 0.0
        %564 = vmatprep.subr.mxu0 0.0
        %565 = vmatpush1.msra.mxu0 0.0
        %566 = vmatprep.subr.mxu0 0.0
        %567 = vmatpush1.msra.mxu0 0.0
        %568 = vmatprep.subr.mxu0 0.0
        %569 = vmatpush1.msra.mxu0 0.0
        %570 = vmatprep.subr.mxu0 0.0
        %571 = vmatpush1.msra.mxu0 0.0
        %572 = vmatprep.subr.mxu0 0.0
        %573 = vmatpush1.msra.mxu0 0.0
        %574 = vmatprep.subr.mxu0 0.0
        %575 = vmatpush1.msra.mxu0 0.0
        %576 = vmatprep.subr.mxu0 0.0
        %577 = vmatpush1.msra.mxu0 0.0
        %578 = vmatprep.subr.mxu0 0.0
        %579 = vmatpush1.msra.mxu0 0.0
        %580 = vmatprep.subr.mxu0 0.0
        %581 = vmatpush1.msra.mxu0 0.0
        %582 = vmatprep.subr.mxu0 0.0
        %583 = vmatpush1.msra.mxu0 0.0
        %584 = vmatprep.mubr.f32.mxu0 0.0
        %585 = vmatmul.mubr.f32.gmra.mrb[0].mxu0 %v442
        %v586 = vpop.f32.mrb[0].mxu0
        %v587 = vadd.f32 0.0, %v586
        %v588 = vpop.f32.mrb[0].mxu0
        %589 = vdwg.mxu0
        %v590 = vmax.f32 %v511, %v587
        %591 = vrot.lane.b32.xlu0 %v424, 96
        %v592 = vpop.permute.xlu0 %591
        %v594 = vsub.f32 %v436, %v592
        %v595 = vmax.f32 %v594, 0.0
        %596 = vmatprep.subr.mxu0 0.0
        %597 = vmatpush1.msra.mxu0 %v595
        %598 = vmatprep.subr.mxu0 0.0
        %599 = vmatpush1.msra.mxu0 0.0
        %600 = vmatprep.subr.mxu0 0.0
        %601 = vmatpush1.msra.mxu0 0.0
        %602 = vmatprep.subr.mxu0 0.0
        %603 = vmatpush1.msra.mxu0 0.0
        %604 = vmatprep.subr.mxu0 0.0
        %605 = vmatpush1.msra.mxu0 0.0
        %606 = vmatprep.subr.mxu0 0.0
        %607 = vmatpush1.msra.mxu0 0.0
        %608 = vmatprep.subr.mxu0 0.0
        %609 = vmatpush1.msra.mxu0 0.0
        %610 = vmatprep.subr.mxu0 0.0
        %611 = vmatpush1.msra.mxu0 0.0
        %612 = vmatprep.subr.mxu0 0.0
        %613 = vmatpush1.msra.mxu0 0.0
        %614 = vmatprep.subr.mxu0 0.0
        %615 = vmatpush1.msra.mxu0 0.0
        %616 = vmatprep.subr.mxu0 0.0
        %617 = vmatpush1.msra.mxu0 0.0
        %618 = vmatprep.subr.mxu0 0.0
        %619 = vmatpush1.msra.mxu0 0.0
        %620 = vmatprep.subr.mxu0 0.0
        %621 = vmatpush1.msra.mxu0 0.0
        %622 = vmatprep.subr.mxu0 0.0
        %623 = vmatpush1.msra.mxu0 0.0
        %624 = vmatprep.subr.mxu0 0.0
        %625 = vmatpush1.msra.mxu0 0.0
        %626 = vmatprep.subr.mxu0 0.0
        %627 = vmatpush1.msra.mxu0 0.0
        %628 = vmatprep.subr.mxu0 0.0
        %629 = vmatpush1.msra.mxu0 0.0
        %630 = vmatprep.subr.mxu0 0.0
        %631 = vmatpush1.msra.mxu0 0.0
        %632 = vmatprep.subr.mxu0 0.0
        %633 = vmatpush1.msra.mxu0 0.0
        %634 = vmatprep.subr.mxu0 0.0
        %635 = vmatpush1.msra.mxu0 0.0
        %636 = vmatprep.subr.mxu0 0.0
        %637 = vmatpush1.msra.mxu0 0.0
        %638 = vmatprep.subr.mxu0 0.0
        %639 = vmatpush1.msra.mxu0 0.0
        %640 = vmatprep.subr.mxu0 0.0
        %641 = vmatpush1.msra.mxu0 0.0
        %642 = vmatprep.subr.mxu0 0.0
        %643 = vmatpush1.msra.mxu0 0.0
        %644 = vmatprep.subr.mxu0 0.0
        %645 = vmatpush1.msra.mxu0 0.0
        %646 = vmatprep.subr.mxu0 0.0
        %647 = vmatpush1.msra.mxu0 0.0
        %648 = vmatprep.subr.mxu0 0.0
        %649 = vmatpush1.msra.mxu0 0.0
        %650 = vmatprep.subr.mxu0 0.0
        %651 = vmatpush1.msra.mxu0 0.0
        %652 = vmatprep.subr.mxu0 0.0
        %653 = vmatpush1.msra.mxu0 0.0
        %654 = vmatprep.subr.mxu0 0.0
        %655 = vmatpush1.msra.mxu0 0.0
        %656 = vmatprep.subr.mxu0 0.0
        %657 = vmatpush1.msra.mxu0 0.0
        %658 = vmatprep.subr.mxu0 0.0
        %659 = vmatpush1.msra.mxu0 0.0
        %660 = vmatprep.mubr.f32.mxu0 0.0
        %661 = vmatmul.mubr.f32.gmra.mrb[0].mxu0 %v442
        %v662 = vpop.f32.mrb[0].mxu0
        %v663 = vadd.f32 0.0, %v662
        %v664 = vpop.f32.mrb[0].mxu0
        %665 = vdwg.mxu0
        %v666 = vmax.f32 %v590, %v663
        %667 = vrot.lane.b32.xlu0 %v424, 80
        %v668 = vpop.permute.xlu0 %667
        %v670 = vsub.f32 %v436, %v668
        %v671 = vmax.f32 %v670, 0.0
        %672 = vmatprep.subr.mxu0 0.0
        %673 = vmatpush1.msra.mxu0 %v671
        %674 = vmatprep.subr.mxu0 0.0
        %675 = vmatpush1.msra.mxu0 0.0
        %676 = vmatprep.subr.mxu0 0.0
        %677 = vmatpush1.msra.mxu0 0.0
        %678 = vmatprep.subr.mxu0 0.0
        %679 = vmatpush1.msra.mxu0 0.0
        %680 = vmatprep.subr.mxu0 0.0
        %681 = vmatpush1.msra.mxu0 0.0
        %682 = vmatprep.subr.mxu0 0.0
        %683 = vmatpush1.msra.mxu0 0.0
        %684 = vmatprep.subr.mxu0 0.0
        %685 = vmatpush1.msra.mxu0 0.0
        %686 = vmatprep.subr.mxu0 0.0
        %687 = vmatpush1.msra.mxu0 0.0
        %688 = vmatprep.subr.mxu0 0.0
        %689 = vmatpush1.msra.mxu0 0.0
        %690 = vmatprep.subr.mxu0 0.0
        %691 = vmatpush1.msra.mxu0 0.0
        %692 = vmatprep.subr.mxu0 0.0
        %693 = vmatpush1.msra.mxu0 0.0
        %694 = vmatprep.subr.mxu0 0.0
        %695 = vmatpush1.msra.mxu0 0.0
        %696 = vmatprep.subr.mxu0 0.0
        %697 = vmatpush1.msra.mxu0 0.0
        %698 = vmatprep.subr.mxu0 0.0
        %699 = vmatpush1.msra.mxu0 0.0
        %700 = vmatprep.subr.mxu0 0.0
        %701 = vmatpush1.msra.mxu0 0.0
        %702 = vmatprep.subr.mxu0 0.0
        %703 = vmatpush1.msra.mxu0 0.0
        %704 = vmatprep.subr.mxu0 0.0
        %705 = vmatpush1.msra.mxu0 0.0
        %706 = vmatprep.subr.mxu0 0.0
        %707 = vmatpush1.msra.mxu0 0.0
        %708 = vmatprep.subr.mxu0 0.0
        %709 = vmatpush1.msra.mxu0 0.0
        %710 = vmatprep.subr.mxu0 0.0
        %711 = vmatpush1.msra.mxu0 0.0
        %712 = vmatprep.subr.mxu0 0.0
        %713 = vmatpush1.msra.mxu0 0.0
        %714 = vmatprep.subr.mxu0 0.0
        %715 = vmatpush1.msra.mxu0 0.0
        %716 = vmatprep.subr.mxu0 0.0
        %717 = vmatpush1.msra.mxu0 0.0
        %718 = vmatprep.subr.mxu0 0.0
        %719 = vmatpush1.msra.mxu0 0.0
        %720 = vmatprep.subr.mxu0 0.0
        %721 = vmatpush1.msra.mxu0 0.0
        %722 = vmatprep.subr.mxu0 0.0
        %723 = vmatpush1.msra.mxu0 0.0
        %724 = vmatprep.subr.mxu0 0.0
        %725 = vmatpush1.msra.mxu0 0.0
        %726 = vmatprep.subr.mxu0 0.0
        %727 = vmatpush1.msra.mxu0 0.0
        %728 = vmatprep.subr.mxu0 0.0
        %729 = vmatpush1.msra.mxu0 0.0
        %730 = vmatprep.subr.mxu0 0.0
        %731 = vmatpush1.msra.mxu0 0.0
        %732 = vmatprep.subr.mxu0 0.0
        %733 = vmatpush1.msra.mxu0 0.0
        %734 = vmatprep.subr.mxu0 0.0
        %735 = vmatpush1.msra.mxu0 0.0
        %736 = vmatprep.mubr.f32.mxu0 0.0
        %737 = vmatmul.mubr.f32.gmra.mrb[0].mxu0 %v442
        %v738 = vpop.f32.mrb[0].mxu0
        %v739 = vadd.f32 0.0, %v738
        %v740 = vpop.f32.mrb[0].mxu0
        %741 = vdwg.mxu0
        %v742 = vmax.f32 %v666, %v739
        %v743 = vld [vmem:[%s5] sm:$0xff]
        %745 = vset.pattern.permute.xlu0 0
        %746 = vperm.xlu0 %745, %v743
        %v747 = vpop.permute.xlu0 %746
        %v749 = vadd.f32 %v742, %v747
        %v750 = vld [vmem:[%s6] sm:$0xff]
        %v751 = vld [vmem:[%s6 + $0x8] sm:$0xff]
        %v752 = vld [vmem:[%s7] sm:$0xff]
        %v753 = vld [vmem:[%s7 + $0x8] sm:$0xff]
        %755 = vset.pattern.permute.xlu0 0
        %756 = vperm.xlu0 %755, %v752
        %v757 = vpop.permute.xlu0 %756
        %760 = vset.pattern.permute.xlu0 0
        %761 = vperm.xlu0 %760, %v753
        %v762 = vpop.permute.xlu0 %761
        %v765 = vsel %vm440, %v750, 0
        %v768 = vsel %vm440, %v751, 0
        %770 = vmatprep.subr.mxu0 0.0
        %771 = vmatpush1.msra.mxu0 %v749
        %772 = vmatprep.subr.mxu0 0.0
        %773 = vmatpush1.msra.mxu0 0.0
        %774 = vmatprep.subr.mxu0 0.0
        %775 = vmatpush1.msra.mxu0 0.0
        %776 = vmatprep.subr.mxu0 0.0
        %777 = vmatpush1.msra.mxu0 0.0
        %778 = vmatprep.subr.mxu0 0.0
        %779 = vmatpush1.msra.mxu0 0.0
        %780 = vmatprep.subr.mxu0 0.0
        %781 = vmatpush1.msra.mxu0 0.0
        %782 = vmatprep.subr.mxu0 0.0
        %783 = vmatpush1.msra.mxu0 0.0
        %784 = vmatprep.subr.mxu0 0.0
        %785 = vmatpush1.msra.mxu0 0.0
        %786 = vmatprep.subr.mxu0 0.0
        %787 = vmatpush1.msra.mxu0 0.0
        %788 = vmatprep.subr.mxu0 0.0
        %789 = vmatpush1.msra.mxu0 0.0
        %790 = vmatprep.subr.mxu0 0.0
        %791 = vmatpush1.msra.mxu0 0.0
        %792 = vmatprep.subr.mxu0 0.0
        %793 = vmatpush1.msra.mxu0 0.0
        %794 = vmatprep.subr.mxu0 0.0
        %795 = vmatpush1.msra.mxu0 0.0
        %796 = vmatprep.subr.mxu0 0.0
        %797 = vmatpush1.msra.mxu0 0.0
        %798 = vmatprep.subr.mxu0 0.0
        %799 = vmatpush1.msra.mxu0 0.0
        %800 = vmatprep.subr.mxu0 0.0
        %801 = vmatpush1.msra.mxu0 0.0
        %802 = vmatprep.subr.mxu0 0.0
        %803 = vmatpush1.msra.mxu0 0.0
        %804 = vmatprep.subr.mxu0 0.0
        %805 = vmatpush1.msra.mxu0 0.0
        %806 = vmatprep.subr.mxu0 0.0
        %807 = vmatpush1.msra.mxu0 0.0
        %808 = vmatprep.subr.mxu0 0.0
        %809 = vmatpush1.msra.mxu0 0.0
        %810 = vmatprep.subr.mxu0 0.0
        %811 = vmatpush1.msra.mxu0 0.0
        %812 = vmatprep.subr.mxu0 0.0
        %813 = vmatpush1.msra.mxu0 0.0
        %814 = vmatprep.subr.mxu0 0.0
        %815 = vmatpush1.msra.mxu0 0.0
        %816 = vmatprep.subr.mxu0 0.0
        %817 = vmatpush1.msra.mxu0 0.0
        %818 = vmatprep.subr.mxu0 0.0
        %819 = vmatpush1.msra.mxu0 0.0
        %820 = vmatprep.subr.mxu0 0.0
        %821 = vmatpush1.msra.mxu0 0.0
        %822 = vmatprep.subr.mxu0 0.0
        %823 = vmatpush1.msra.mxu0 0.0
        %824 = vmatprep.subr.mxu0 0.0
        %825 = vmatpush1.msra.mxu0 0.0
        %826 = vmatprep.subr.mxu0 0.0
        %827 = vmatpush1.msra.mxu0 0.0
        %828 = vmatprep.subr.mxu0 0.0
        %829 = vmatpush1.msra.mxu0 0.0
        %830 = vmatprep.subr.mxu0 0.0
        %831 = vmatpush1.msra.mxu0 0.0
        %832 = vmatprep.subr.mxu0 0.0
        %833 = vmatpush1.msra.mxu0 0.0
        %834 = vmatprep.mubr.f32.mxu0 0.0
        %835 = vmatmul.mubr.f32.gmra.mrb[0].mxu0 %v765
        %v836 = vpop.f32.mrb[0].mxu0
        %v837 = vadd.f32 %v757, %v836
        %v838 = vpop.f32.mrb[0].mxu0
        %839 = vmatprep.mubr.f32.mxu0 0.0
        %840 = vmatmul.mubr.f32.gmra.mrb[0].mxu0 %v768
        %v841 = vpop.f32.mrb[0].mxu0
        %v842 = vadd.f32 %v762, %v841
        %v843 = vpop.f32.mrb[0].mxu0
        %844 = vdwg.mxu0
        %845 = vst.msk [vmem:[%s350] sm:$0xff] %vm385, %v837
        %846 = vst.msk [vmem:[%s350 + $0x8] sm:$0xff] %vm385, %v842
        %s847 = sand.u32 %s231, 1
        %s848 = scalar_lea.sflag [#allocation3], %s847
        %s849 = sand.u32 %s231, 1
        %s850 = smul.addr %s849, 16
        %s851 = scalar_lea.vmem [#allocation2], %s850
        // Predicated region
        $region53: #{tpu_custom_call.1} parent=51 // pred_check
          %p852 = pneg %p241
        $region54: #{tpu_custom_call.1} parent=51 // pred_check_branch
          %854 = sbr.rel (%p852) target = $region56
        $region55: #{tpu_custom_call.1} parent=51 // pred_region
          %s856 = ssub.s32 256, 256
          %857 = vsyncadd %s848, %s856
          %s858 = smul.addr %s26, 2
          %s859 = sadd.s32 %s27, %s858
          %s860 = smul.addr %s859, 128
          %s861 = scalar_lea.hbm %s8, %s860
          %s862 = sshll.u32 %s851, 4
          %s863 = int_to_ptr.vmem [resolvable:$true] %s862
          %868 = dma.vmem_to_hbm [thread:$0]  %s863, 256, %s861, %s848, 128, 128, 8
        $region56: #{tpu_custom_call.1} parent=51 // pred_fallthru
          _
      $region52: #{tpu_custom_call.1} parent=5 // pred_fallthru
        _
      %p869 = scmp.le.s32.totalorder 2, %s17
      // Predicated region
      $region57: #{tpu_custom_call.1} parent=5 // pred_check
        %p870 = pneg %p869
      $region58: #{tpu_custom_call.1} parent=5 // pred_check_branch
        %872 = sbr.rel (%p870) target = $region60
      $region59: #{tpu_custom_call.1} parent=5 // pred_region
        %s873 = ssub.s32 %s17, 2
        // Predicated region
        $region61: #{tpu_custom_call.1} parent=59 // pred_check
          %p874 = pneg %p247
        $region62: #{tpu_custom_call.1} parent=59 // pred_check_branch
          %876 = sbr.rel (%p874) target = $region64
        $region63: #{tpu_custom_call.1} parent=59 // pred_region
          %s877 = sand.u32 %s232, 1
          %s878 = scalar_lea.sflag [#allocation3], %s877
          %s879 = sand.u32 %s232, 1
          %s880 = smul.addr %s879, 16
          %s881 = scalar_lea.vmem [#allocation2], %s880
          %882 = dma.done %s878, 256
        $region64: #{tpu_custom_call.1} parent=59 // pred_fallthru
          _
      $region60: #{tpu_custom_call.1} parent=5 // pred_fallthru
        _
    $region6: #{tpu_custom_call.1} parent=1 // loop_footer
      %s21 = sadd.s32 1, %s17
    $region7: #{tpu_custom_call.1} parent=1 // loop_footer_branch
      %16 = sbr.rel target = $region3
    $region8: #{tpu_custom_call.1} parent=1 // loop_exit
      _
    %883 = vsyncpa [#allocation3], 1
    %s884 = scalar_lea.sflag [#allocation3], 1
    %885 = vsyncpa %s884, 1

</llo_original>
